<compile_context>
chip_gen: v7x
topology: tpu7x:2x2x1
jax: 0.10.0
libtpu: 0.0.40
codegen_flags: <defaults>
</compile_context>

<pallas_src>
import functools
import math

import jax
import jax.numpy as jnp
from jax.experimental import pallas as pl
from jax.experimental.pallas import tpu as pltpu


_MIN_GRID_STEPS = 8                 # give v7x's two TensorCores work to split
_MIN_BLOCK_ROWS = 256               # amortize ~0.35us per-grid-step overhead
_DEFAULT_VMEM_BUDGET = 12 * 1024 * 1024   # double-buffered in+out block target


def _round_up(x, m):
    return ((x + m - 1) // m) * m


def _gaussian_kernel(a_ref, sel_ref, f_ref, o_ref, *, neg_inv_var2):
    """One grid step.

    a_ref  : (R, Kp) bf16 -- [hi | mid | lo | 0-pad] 3-way bf16 split of the P
                             packed distances of each row (hi+mid+lo == f32 d).
    sel_ref: (Kp, L) bf16 -- constant 0/1 selection matrix; column j has ones at
                             rows {k, P+k, 2P+k} with k = j // F.
    f_ref  : (1, L)  f32  -- Gaussian centers tiled P times.
    o_ref  : (R, L)  f32  -- lane-dense output block; column j holds filter bin
                             (j % F) of distance (row * P + j // F).
    """
    # MXU does the lane selection and the exact hi+mid+lo reconstruction in its
    # f32 accumulator; VPU keeps only sub/mul/mul per vreg, exp goes to the EUP.
    d_sel = jnp.dot(a_ref[...], sel_ref[...],
                    preferred_element_type=jnp.float32)      # (R, L), exact d
    diff = d_sel - f_ref[...]
    o_ref[...] = jnp.exp((diff * diff) * neg_inv_var2)


def _pick_pack(n, F, max_p=32):
    """Pack factor P (distances per packed output row, lane width L = P*F).

    Prefers divisors of n (no padding, no output copy); score is output-vreg
    utilisation (lanes * sublanes), tie-broken toward larger P since the MXU
    selection cost does not grow with P and larger P shrinks relative input
    padding.  If no divisor is decent (prime-ish n) fall back to P=max_p and pad
    the (tiny) input instead of eating the P=1 cliff.
    """
    def score(p):
        rows = -(-n // p)
        return (n * F) / (_round_up(rows, 8) * _round_up(p * F, 128))

    best_p, best_s = 1, score(1)
    for p in range(2, max_p + 1):
        if n % p:
            continue
        s = score(p)
        if s > best_s + 1e-9 or (abs(s - best_s) <= 1e-9 and p > best_p):
            best_p, best_s = p, s
    if best_s < 0.45 and n >= 4 * max_p:
        return max_p            # pad path: rescue the P=1 / bad-divisor cliff
    return best_p


def _choose_tile(n_rows, in_row_bytes, out_row_bytes, vmem_budget):
    """Rows per grid step: as big as the (true, input-inclusive) VMEM budget
    allows, while keeping >= _MIN_GRID_STEPS steps for large inputs."""
    per_row = 2 * (in_row_bytes + out_row_bytes)        # x2: double buffering
    cap = max(8, (vmem_budget // per_row) // 8 * 8)
    if n_rows <= 8:
        return n_rows
    want = max(_MIN_BLOCK_ROWS, _round_up(-(-n_rows // _MIN_GRID_STEPS), 8))
    tile = min(cap, want)
    return n_rows if tile >= n_rows else tile


@functools.partial(jax.jit,
                   static_argnames=("F", "P", "neg_inv_var2", "vmem_budget"))
def _gaussian_expand(distances, filt, *, F, P, neg_inv_var2, vmem_budget):
    orig_shape = distances.shape
    flat = distances.astype(jnp.float32).reshape(-1)
    n = flat.shape[0]
    n_rows = -(-n // P)                  # P need not divide n (tail is padded)
    pad = n_rows * P - n
    if pad:
        flat = jnp.concatenate([flat, jnp.zeros((pad,), jnp.float32)])

    # Exact 3-way bf16 split: hi + mid + lo == flat bit-for-bit, so the single
    # bf16 MXU pass against a 0/1 selection matrix reproduces the f32 distances
    # exactly in the f32 accumulator.  These ops touch only the (F-times smaller)
    # input, so their cost is negligible vs the output.
    hi = flat.astype(jnp.bfloat16)
    r1 = flat - hi.astype(jnp.float32)
    mid = r1.astype(jnp.bfloat16)
    lo = (r1 - mid.astype(jnp.float32)).astype(jnp.bfloat16)

    L = P * F
    Kp = _round_up(3 * P, 8)             # tidy contraction dim (zero-padded)
    pieces = [hi.reshape(n_rows, P), mid.reshape(n_rows, P),
              lo.reshape(n_rows, P)]
    if Kp > 3 * P:
        pieces.append(jnp.zeros((n_rows, Kp - 3 * P), jnp.bfloat16))
    a = jnp.concatenate(pieces, axis=1)                       # (n_rows, Kp) bf16

    # Constant selection matrix (folded by XLA) and tiled Gaussian centers.
    slot = jnp.arange(L, dtype=jnp.int32) // F                # (L,)
    col = jnp.arange(Kp, dtype=jnp.int32)                     # (Kp,)
    sel = (((col[:, None] % P) == slot[None, :])
           & (col[:, None] < 3 * P)).astype(jnp.bfloat16)     # (Kp, L)
    filt_row = jnp.tile(filt.astype(jnp.float32), P).reshape(1, L)

    # VMEM accounting includes the lane-padded input block (not just the output).
    in_row_bytes = _round_up(Kp, 128) * 2          # bf16 A block row (padded)
    out_row_bytes = _round_up(L, 128) * 4          # f32 output block row (padded)
    tile = _choose_tile(n_rows, in_row_bytes, out_row_bytes, vmem_budget)
    grid = (pl.cdiv(n_rows, tile),)      # ragged last block is masked on store

    resident = 2 * (_round_up(Kp, 8) * _round_up(L, 128) * 2
                    + 8 * _round_up(L, 128) * 4)
    footprint = 2 * _round_up(tile, 8) * (in_row_bytes + out_row_bytes) + resident
    vmem_limit = int(min(max(footprint + (8 << 20), 32 << 20), 56 << 20))

    kernel = functools.partial(_gaussian_kernel, neg_inv_var2=neg_inv_var2)
    out2d = pl.pallas_call(
        kernel,
        out_shape=jax.ShapeDtypeStruct((n_rows, L), jnp.float32),
        grid_spec=pltpu.PrefetchScalarGridSpec(
            num_scalar_prefetch=0,
            grid=grid,
            in_specs=[
                pl.BlockSpec((tile, Kp), lambda i: (i, 0)),
                pl.BlockSpec((Kp, L), lambda i: (0, 0)),   # resident constant
                pl.BlockSpec((1, L), lambda i: (0, 0)),    # resident constant
            ],
            out_specs=pl.BlockSpec((tile, L), lambda i: (i, 0)),
        ),
        # TODO(synk): if plain "parallel" does not shard across v7x's two
        # TensorCores, switch to an explicit size-2 leading axis / CORE_PARALLEL.
        compiler_params=pltpu.CompilerParams(
            dimension_semantics=("parallel",),
            vmem_limit_bytes=vmem_limit),
    )(a, sel, filt_row)

    if pad:
        # Pathological n only (no decent pack factor divides it): one extra copy
        # of the output to drop the padded tail elements.
        # TODO(synk): a bulk+remainder split could avoid this copy if it matters.
        return out2d.reshape(-1)[: n * F].reshape(*orig_shape, F)
    # (n_rows, P*F) row-major is the same buffer layout as (n, F): free reshape.
    return out2d.reshape(*orig_shape, F)


class GaussianDistancePallas:
    """Expands distances by a Gaussian basis (unit: angstrom) via Pallas."""

    def __init__(self, dmin, dmax, step, var=None,
                 vmem_budget_bytes=_DEFAULT_VMEM_BUDGET):
        assert dmin < dmax
        assert dmax - dmin > step
        # Same double-precision length formula torch.arange uses for float steps.
        F = int(math.ceil((dmax + step - dmin) / step))
        self.F = F
        # Values dmin + i*step in f32 (may differ from torch.arange by <=1 ulp).
        self.filter = (jnp.float32(dmin)
                       + jnp.float32(step) * jnp.arange(F, dtype=jnp.float32))
        self.var = float(step if var is None else var)
        self.neg_inv_var2 = float(-1.0 / (self.var * self.var))
        self.vmem_budget_bytes = int(vmem_budget_bytes)

    def expand(self, distances):
        distances = jnp.asarray(distances)
        if distances.size == 0:
            return jnp.zeros((*distances.shape, self.F), jnp.float32)
        P = _pick_pack(int(distances.size), self.F)
        return _gaussian_expand(distances, self.filter,
                                F=self.F, P=P,
                                neg_inv_var2=self.neg_inv_var2,
                                vmem_budget=self.vmem_budget_bytes)

    __call__ = expand


if __name__ == "__main__":
    key = jax.random.PRNGKey(0)
    k1, k2 = jax.random.split(key)
    dmin, dmax, step = 0.0, 6.0, 0.2
    gd = GaussianDistancePallas(dmin, dmax, step)

    # Main example: (2, 4, 16) distance tensor (n = 128 -> P = 16, 8 packed rows).
    d1 = jax.random.uniform(k1, (2, 4, 16), minval=dmin, maxval=dmax,
                            dtype=jnp.float32)
    out1 = jax.block_until_ready(gd(d1))
    ref1 = jnp.exp(-(d1[..., None] - gd.filter) ** 2 / gd.var ** 2)
    assert out1.shape == (*d1.shape, gd.F)
    assert jnp.allclose(out1, ref1, atol=1e-6, rtol=1e-6)

    # Odd-sized input exercises a different packing factor (n = 15 -> P = 3).
    d2 = jax.random.uniform(k2, (3, 5), minval=dmin, maxval=dmax,
                            dtype=jnp.float32)
    out2 = jax.block_until_ready(gd(d2))
    ref2 = jnp.exp(-(d2[..., None] - gd.filter) ** 2 / gd.var ** 2)
    assert out2.shape == (3, 5, gd.F)
    assert jnp.allclose(out2, ref2, atol=1e-6, rtol=1e-6)

    print("KERNEL_OK")
</pallas_src>

<mosaic_0001>
module attributes {stable_mosaic.version = 11 : i64} {
  func.func @_gaussian_kernel(%arg0: i32, %arg1: memref<8x48xbf16, #tpu.memory_space<vmem>>, %arg2: memref<48x496xbf16, #tpu.memory_space<vmem>>, %arg3: memref<1x496xf32, #tpu.memory_space<vmem>>, %arg4: memref<8x496xf32, #tpu.memory_space<vmem>>) attributes {dimension_semantics = [#tpu.dimension_semantics<parallel>], iteration_bounds = array<i64: 1>, scalar_prefetch = 0 : i64, scratch_operands = 0 : i64, tpu.core_type = #tpu.core_type<tc>, window_params = [{transform_indices = @transform_0, window_bounds = array<i64: 8, 48>}, {pipeline_mode = #tpu.pipeline_mode<synchronous>, transform_indices = @transform_1, window_bounds = array<i64: 48, 496>}, {pipeline_mode = #tpu.pipeline_mode<synchronous>, transform_indices = @transform_2, window_bounds = array<i64: 1, 496>}, {transform_indices = @transform_3, window_bounds = array<i64: 8, 496>}]} {
    %c0 = arith.constant 0 : index
    %c0_0 = arith.constant 0 : index
    %0 = vector.load %arg1[%c0, %c0_0] : memref<8x48xbf16, #tpu.memory_space<vmem>>, vector<8x48xbf16>
    %c0_1 = arith.constant 0 : index
    %c0_2 = arith.constant 0 : index
    %1 = vector.load %arg2[%c0_1, %c0_2] : memref<48x496xbf16, #tpu.memory_space<vmem>>, vector<48x496xbf16>
    %cst = arith.constant dense<0.000000e+00> : vector<8x496xf32>
    %2 = tpu.matmul %0, %1, %cst {dimension_numbers = #tpu.dot_dimension_numbers<[1], [0], [0], [1], [0, 0, 1, 1], [], []>} : vector<8x48xbf16>, vector<48x496xbf16>, vector<8x496xf32> -> vector<8x496xf32>
    %c0_3 = arith.constant 0 : index
    %c0_4 = arith.constant 0 : index
    %3 = vector.load %arg3[%c0_3, %c0_4] : memref<1x496xf32, #tpu.memory_space<vmem>>, vector<1x496xf32>
    %4 = vector.broadcast %3 : vector<1x496xf32> to vector<8x496xf32>
    %5 = arith.subf %2, %4 : vector<8x496xf32>
    %6 = arith.mulf %5, %5 : vector<8x496xf32>
    %cst_5 = arith.constant -2.500000e+01 : f32
    %7 = vector.broadcast %cst_5 : f32 to vector<8x496xf32>
    %8 = arith.mulf %6, %7 : vector<8x496xf32>
    %9 = math.exp %8 : vector<8x496xf32>
    %c0_6 = arith.constant 0 : index
    %c0_7 = arith.constant 0 : index
    %10 = vector.load %arg4[%c0_6, %c0_7] : memref<8x496xf32, #tpu.memory_space<vmem>>, vector<8x496xf32>
    tpu.vector_store %arg4[%c0_6, %c0_7], %9 {strides = array<i32>} : memref<8x496xf32, #tpu.memory_space<vmem>>, vector<8x496xf32>,
    return
  }
  func.func @transform_0(%arg0: i32) -> (i32, i32) {
    %c0_i32 = arith.constant 0 : i32
    %c0_i32_0 = arith.constant 0 : i32
    return %arg0, %c0_i32 : i32, i32
  }
  func.func @transform_1(%arg0: i32) -> (i32, i32) {
    %c0_i32 = arith.constant 0 : i32
    %c0_i32_0 = arith.constant 0 : i32
    %c0_i32_1 = arith.constant 0 : i32
    return %c0_i32, %c0_i32_0 : i32, i32
  }
  func.func @transform_2(%arg0: i32) -> (i32, i32) {
    %c0_i32 = arith.constant 0 : i32
    %c0_i32_0 = arith.constant 0 : i32
    %c0_i32_1 = arith.constant 0 : i32
    return %c0_i32, %c0_i32_0 : i32, i32
  }
  func.func @transform_3(%arg0: i32) -> (i32, i32) {
    %c0_i32 = arith.constant 0 : i32
    %c0_i32_0 = arith.constant 0 : i32
    return %arg0, %c0_i32 : i32, i32
  }
}

</mosaic_0001>

<llo_original>
// kernel: tile.8
$region0: #{tile.8}
  #allocation0 [shape = 's32[1]{0}', space=sflag, size = 0x4, scoped, tag = 'scoped memory for tile.8']
  %s0 = inlined_call_operand.vmem [shape: f32[31], index: 0, kind: input, shape index: {}]
  %s1 = inlined_call_operand.vmem [shape: f32[16,31], index: 1, kind: output, shape index: {}]
  // Predicated region
  $region2: #{tile.8} parent=0 // pred_check
    _
  $region3: #{tile.8} parent=0 // pred_check_branch
    %3 = sbr.rel (0) target = $region5
  $region4: #{tile.8} parent=0 // pred_region
    _
  $region5: #{tile.8} parent=0 // pred_fallthru
    _
  %v4 = vld [vmem:[%s0] ss:$0 sm:$0xff]
  %5 = vst [vmem:[%s1] sm:$0xff] %v4
  %s6 = scalar_lea.vmem %s1, 8
  %7 = vst [vmem:[%s6] sm:$0xff] %v4

// kernel: tile.9
$region0: #{tile.9}
  %s0 = inlined_call_operand.vmem [shape: f32[16,31], index: 0, kind: input, shape index: {}]
  %s1 = inlined_call_operand.vmem [shape: f32[1,496], index: 1, kind: output, shape index: {}]
  $region1: #{tile.9} parent=0
    #allocation0 [shape = 'u8[16384]{0}', space=vmem, size = 0x4000, scoped, tag = 'scoped mem for output reshape']
    %v2 = vld [vmem:[%s0] sm:$0x1]
    %vm3 = vcmask 252928
    %4 = vst.msk [vmem:[#allocation0] sm:$0x1] %vm3, %v2
    %s5 = scalar_lea.vmem %s0, 4
    %v6 = vld [vmem:[%s5] sm:$0x1]
    %s7 = scalar_lea.vmem %s0, 4
    %v8 = vld [vmem:[%s7] sm:$0x1]
    %vm9 = vcmask 31744
    %v10 = vsel %vm9, %v8, %v6
    %11 = vrot.lane.b32.xlu0 %v10, 124
    %v12 = vpop.permute.xlu0 %11
    %vm13 = vcmask 220160
    %s14 = scalar_lea.vmem [#allocation0], 8
    %15 = vst.msk [vmem:[%s14] sm:$0x1] %vm13, %v12
    %vm16 = vcmask 1048544
    %17 = vst.msk [vmem:[#allocation0] sm:$0x1] %vm16, %v12
    %s18 = scalar_lea.vmem %s0, 8
    %v19 = vld [vmem:[%s18] sm:$0x1]
    %s20 = scalar_lea.vmem %s0, 8
    %v21 = vld [vmem:[%s20] sm:$0x1]
    %vm22 = vcmask 64512
    %v23 = vsel %vm22, %v21, %v19
    %24 = vrot.lane.b32.xlu0 %v23, 120
    %v25 = vpop.permute.xlu0 %24
    %vm26 = vcmask 187392
    %s27 = scalar_lea.vmem [#allocation0], 16
    %28 = vst.msk [vmem:[%s27] sm:$0x1] %vm26, %v25
    %vm29 = vcmask 1048512
    %s30 = scalar_lea.vmem [#allocation0], 8
    %31 = vst.msk [vmem:[%s30] sm:$0x1] %vm29, %v25
    %s32 = scalar_lea.vmem %s0, 12
    %v33 = vld [vmem:[%s32] sm:$0x1]
    %s34 = scalar_lea.vmem %s0, 12
    %v35 = vld [vmem:[%s34] sm:$0x1]
    %vm36 = vcmask 97280
    %v37 = vsel %vm36, %v35, %v33
    %38 = vrot.lane.b32.xlu0 %v37, 116
    %v39 = vpop.permute.xlu0 %38
    %vm40 = vcmask 154624
    %s41 = scalar_lea.vmem [#allocation0], 24
    %42 = vst.msk [vmem:[%s41] sm:$0x1] %vm40, %v39
    %vm43 = vcmask 1048480
    %s44 = scalar_lea.vmem [#allocation0], 16
    %45 = vst.msk [vmem:[%s44] sm:$0x1] %vm43, %v39
    %s46 = scalar_lea.vmem %s0, 3
    %v47 = vld [vmem:[%s46] sm:$0x1]
    %48 = vrot.lane.b32.xlu0 %v47, 93
    %v49 = vpop.permute.xlu0 %48
    %vm50 = vcmask 1015528
    %51 = vst.msk [vmem:[#allocation0] sm:$0x1] %vm50, %v49
    %s52 = scalar_lea.vmem %s0, 7
    %v53 = vld [vmem:[%s52] sm:$0x1]
    %54 = vrot.lane.b32.xlu0 %v53, 89
    %v55 = vpop.permute.xlu0 %54
    %vm56 = vcmask 982728
    %s57 = scalar_lea.vmem [#allocation0], 8
    %58 = vst.msk [vmem:[%s57] sm:$0x1] %vm56, %v55
    %s59 = scalar_lea.vmem %s0, 11
    %v60 = vld [vmem:[%s59] sm:$0x1]
    %61 = vrot.lane.b32.xlu0 %v60, 85
    %v62 = vpop.permute.xlu0 %61
    %vm63 = vcmask 949928
    %s64 = scalar_lea.vmem [#allocation0], 16
    %65 = vst.msk [vmem:[%s64] sm:$0x1] %vm63, %v62
    %s66 = scalar_lea.vmem %s0, 15
    %v67 = vld [vmem:[%s66] sm:$0x1]
    %68 = vrot.lane.b32.xlu0 %v67, 81
    %v69 = vpop.permute.xlu0 %68
    %vm70 = vcmask 917128
    %s71 = scalar_lea.vmem [#allocation0], 24
    %72 = vst.msk [vmem:[%s71] sm:$0x1] %vm70, %v69
    %s73 = scalar_lea.vmem %s0, 2
    %v74 = vld [vmem:[%s73] sm:$0x1]
    %75 = vrot.lane.b32.xlu0 %v74, 62
    %v76 = vpop.permute.xlu0 %75
    %vm77 = vcmask 761328
    %78 = vst.msk [vmem:[#allocation0] sm:$0x1] %vm77, %v76
    %s79 = scalar_lea.vmem %s0, 6
    %v80 = vld [vmem:[%s79] sm:$0x1]
    %81 = vrot.lane.b32.xlu0 %v80, 58
    %v82 = vpop.permute.xlu0 %81
    %vm83 = vcmask 728528
    %s84 = scalar_lea.vmem [#allocation0], 8
    %85 = vst.msk [vmem:[%s84] sm:$0x1] %vm83, %v82
    %s86 = scalar_lea.vmem %s0, 10
    %v87 = vld [vmem:[%s86] sm:$0x1]
    %88 = vrot.lane.b32.xlu0 %v87, 54
    %v89 = vpop.permute.xlu0 %88
    %vm90 = vcmask 695728
    %s91 = scalar_lea.vmem [#allocation0], 16
    %92 = vst.msk [vmem:[%s91] sm:$0x1] %vm90, %v89
    %s93 = scalar_lea.vmem %s0, 14
    %v94 = vld [vmem:[%s93] sm:$0x1]
    %95 = vrot.lane.b32.xlu0 %v94, 50
    %v96 = vpop.permute.xlu0 %95
    %vm97 = vcmask 662928
    %s98 = scalar_lea.vmem [#allocation0], 24
    %99 = vst.msk [vmem:[%s98] sm:$0x1] %vm97, %v96
    %s100 = scalar_lea.vmem %s0, 1
    %v101 = vld [vmem:[%s100] sm:$0x1]
    %102 = vrot.lane.b32.xlu0 %v101, 31
    %v103 = vpop.permute.xlu0 %102
    %vm104 = vcmask 507128
    %105 = vst.msk [vmem:[#allocation0] sm:$0x1] %vm104, %v103
    %s106 = scalar_lea.vmem %s0, 5
    %v107 = vld [vmem:[%s106] sm:$0x1]
    %108 = vrot.lane.b32.xlu0 %v107, 27
    %v109 = vpop.permute.xlu0 %108
    %vm110 = vcmask 474328
    %s111 = scalar_lea.vmem [#allocation0], 8
    %112 = vst.msk [vmem:[%s111] sm:$0x1] %vm110, %v109
    %s113 = scalar_lea.vmem %s0, 9
    %v114 = vld [vmem:[%s113] sm:$0x1]
    %115 = vrot.lane.b32.xlu0 %v114, 23
    %v116 = vpop.permute.xlu0 %115
    %vm117 = vcmask 441528
    %s118 = scalar_lea.vmem [#allocation0], 16
    %119 = vst.msk [vmem:[%s118] sm:$0x1] %vm117, %v116
    %s120 = scalar_lea.vmem %s0, 13
    %v121 = vld [vmem:[%s120] sm:$0x1]
    %122 = vrot.lane.b32.xlu0 %v121, 19
    %v123 = vpop.permute.xlu0 %122
    %vm124 = vcmask 408728
    %s125 = scalar_lea.vmem [#allocation0], 24
    %126 = vst.msk [vmem:[%s125] sm:$0x1] %vm124, %v123
    %s128 = sshllo.u32 0, 1
    %v130 = vld [vmem:[#allocation0] sm:%s128]
    %s131 = sshllo.u32 0, 1
    %132 = vst [vmem:[%s1] sm:%s131] %v130
    %s133 = scalar_lea.vmem [#allocation0], 8
    %v134 = vld [vmem:[%s133] sm:%s128]
    %s135 = sshllo.u32 0, 1
    %s136 = scalar_lea.vmem %s1, 1
    %137 = vst [vmem:[%s136] sm:%s135] %v134
    %s138 = scalar_lea.vmem [#allocation0], 16
    %v139 = vld [vmem:[%s138] sm:%s128]
    %s140 = sshllo.u32 0, 1
    %s141 = smul.addr 1, 2
    %s142 = scalar_lea.vmem %s1, %s141
    %143 = vst [vmem:[%s142] sm:%s140] %v139
    %s144 = scalar_lea.vmem [#allocation0], 24
    %v145 = vld [vmem:[%s144] sm:%s128]
    %s146 = sshllo.u32 0, 1
    %s147 = smul.addr 1, 3
    %s148 = scalar_lea.vmem %s1, %s147
    %149 = vst [vmem:[%s148] sm:%s146] %v145

// kernel: _gaussian_expand.1
$region0: #{_gaussian_expand.1}
  #allocation0 [shape = 'u32[]', space=smem, size = 0x4, offset = 0x4, fixed_abs, tag = 'smem constant byte address 0x4 - core index']
  #allocation1 [shape = 'u32[144,128]{1,0:T(1,128)}', space=vmem, size = 0x12000, scoped, tag = 'internal scratch']
  %s0 = inlined_call_operand.vmem [shape: bf16[8,48], index: 0, kind: input, shape index: {}]
  %s1 = inlined_call_operand.vmem [shape: bf16[48,496], index: 1, kind: input, shape index: {}]
  %s2 = inlined_call_operand.vmem [shape: f32[1,496], index: 2, kind: input, shape index: {}]
  %s3 = inlined_call_operand.vmem [shape: f32[8,496], index: 3, kind: output, shape index: {}]
  %s4 = sld [smem:[#allocation0]]
  $region22: #{_gaussian_expand.1} parent=0
    _
  %s6 = ssub.s32 1, %s4
  %s7 = scalar_select 0, %s6, %s4
  // Predicated region
  $region2: #{_gaussian_expand.1} parent=0 // pred_check
    _
  $region3: #{_gaussian_expand.1} parent=0 // pred_check_branch
    %9 = sbr.rel (0) target = $region5
  $region4: #{_gaussian_expand.1} parent=0 // pred_region
    _
  $region5: #{_gaussian_expand.1} parent=0 // pred_fallthru
    _
  // Predicated region
  $region6: #{_gaussian_expand.1} parent=0 // pred_check
    _
  $region7: #{_gaussian_expand.1} parent=0 // pred_check_branch
    %11 = sbr.rel (0) target = $region9
  $region8: #{_gaussian_expand.1} parent=0 // pred_region
    _
  $region9: #{_gaussian_expand.1} parent=0 // pred_fallthru
    _
  // Predicated region
  $region10: #{_gaussian_expand.1} parent=0 // pred_check
    _
  $region11: #{_gaussian_expand.1} parent=0 // pred_check_branch
    %13 = sbr.rel (0) target = $region13
  $region12: #{_gaussian_expand.1} parent=0 // pred_region
    _
  $region13: #{_gaussian_expand.1} parent=0 // pred_fallthru
    _
  %v15 = vld [vmem:[%s0] sm:$0xf]
  %v16 = vld [vmem:[%s1] sm:$0xff]
  %v17 = vld [vmem:[%s1 + $0x8] sm:$0xff]
  %v18 = vld [vmem:[%s1 + $0x10] sm:$0xff]
  %v19 = vld [vmem:[%s1 + $0x18] sm:$0xff]
  %v20 = vld [vmem:[%s1 + $0x20] sm:$0xff]
  %v21 = vld [vmem:[%s1 + $0x28] sm:$0xff]
  %v22 = vld [vmem:[%s1 + $0x30] sm:$0xff]
  %v23 = vld [vmem:[%s1 + $0x38] sm:$0xff]
  %v24 = vld [vmem:[%s1 + $0x40] sm:$0xff]
  %v25 = vld [vmem:[%s1 + $0x48] sm:$0xff]
  %v26 = vld [vmem:[%s1 + $0x50] sm:$0xff]
  %v27 = vld [vmem:[%s1 + $0x58] sm:$0xff]
  %v40 = vunpack.c.l.b16 %v16
  %v41 = vunpack.c.h.b16 %v16
  %v42 = vunpack.c.l.b16 %v17
  %v43 = vunpack.c.h.b16 %v17
  %v44 = vunpack.c.l.b16 %v18
  %v45 = vunpack.c.h.b16 %v18
  %v46 = vunpack.c.l.b16 %v19
  %v47 = vunpack.c.h.b16 %v19
  %v48 = vunpack.c.l.b16 %v20
  %v49 = vunpack.c.h.b16 %v20
  %v50 = vunpack.c.l.b16 %v21
  %v51 = vunpack.c.h.b16 %v21
  %v52 = vunpack.c.l.b16 %v22
  %v53 = vunpack.c.h.b16 %v22
  %v54 = vunpack.c.l.b16 %v23
  %v55 = vunpack.c.h.b16 %v23
  %v56 = vunpack.c.l.b16 %v24
  %v57 = vunpack.c.h.b16 %v24
  %v58 = vunpack.c.l.b16 %v25
  %v59 = vunpack.c.h.b16 %v25
  %v60 = vunpack.c.l.b16 %v26
  %v61 = vunpack.c.h.b16 %v26
  %v62 = vunpack.c.l.b16 %v27
  %v63 = vunpack.c.h.b16 %v27
  %v64 = vpack.c.b16 %v44, %v40
  %v65 = vpack.c.b16 %v45, %v41
  %v66 = vpack.c.b16 %v46, %v42
  %v67 = vpack.c.b16 %v47, %v43
  %v68 = vpack.c.b16 %v52, %v48
  %v69 = vpack.c.b16 %v53, %v49
  %v70 = vpack.c.b16 %v54, %v50
  %v71 = vpack.c.b16 %v55, %v51
  %v72 = vpack.c.b16 %v60, %v56
  %v73 = vpack.c.b16 %v61, %v57
  %v74 = vpack.c.b16 %v62, %v58
  %v75 = vpack.c.b16 %v63, %v59
  %vm88 = vcmask 392192
  %v90 = vsel %vm88, %v15, 0
  %92 = vmatprep.subr.bf16.mxu0 %v65
  %93 = vmatpush1.bf16.msra.mxu0 %v64
  %94 = vmatprep.subr.bf16.mxu0 %v69
  %95 = vmatpush1.bf16.msra.mxu0 %v68
  %96 = vmatprep.subr.bf16.mxu0 %v73
  %97 = vmatpush1.bf16.msra.mxu0 %v72
  %98 = vmatprep.subr.bf16.mxu0 0
  %99 = vmatpush1.bf16.msra.mxu0 0
  %100 = vmatprep.subr.bf16.mxu0 0
  %101 = vmatpush1.bf16.msra.mxu0 0
  %102 = vmatprep.subr.bf16.mxu0 0
  %103 = vmatpush1.bf16.msra.mxu0 0
  %104 = vmatprep.subr.bf16.mxu0 0
  %105 = vmatpush1.bf16.msra.mxu0 0
  %106 = vmatprep.subr.bf16.mxu0 0
  %107 = vmatpush1.bf16.msra.mxu0 0
  %108 = vmatprep.subr.bf16.mxu0 0
  %109 = vmatpush1.bf16.msra.mxu0 0
  %110 = vmatprep.subr.bf16.mxu0 0
  %111 = vmatpush1.bf16.msra.mxu0 0
  %112 = vmatprep.subr.bf16.mxu0 0
  %113 = vmatpush1.bf16.msra.mxu0 0
  %114 = vmatprep.subr.bf16.mxu0 0
  %115 = vmatpush1.bf16.msra.mxu0 0
  %116 = vmatprep.subr.bf16.mxu0 0
  %117 = vmatpush1.bf16.msra.mxu0 0
  %118 = vmatprep.subr.bf16.mxu0 0
  %119 = vmatpush1.bf16.msra.mxu0 0
  %120 = vmatprep.subr.bf16.mxu0 0
  %121 = vmatpush1.bf16.msra.mxu0 0
  %122 = vmatprep.subr.bf16.mxu0 0
  %123 = vmatpush1.bf16.msra.mxu0 0
  %124 = vmatprep.mubr.bf16.mxu0 0
  %125 = vmatmul.mubr.bf16.gmra.mrb[0].mxu0 %v90
  %v126 = vpop.f32.mrb[0].mxu0
  %v127 = vadd.f32 0.0, %v126
  %v128 = vpop.f32.mrb[0].mxu0
  %v129 = vadd.f32 0.0, %v128
  %v130 = vpop.f32.mrb[0].mxu0
  %v131 = vpop.f32.mrb[0].mxu0
  %132 = vdwg.mxu0
  %133 = vmatprep.subr.bf16.mxu0 %v67
  %134 = vmatpush1.bf16.msra.mxu0 %v66
  %135 = vmatprep.subr.bf16.mxu0 %v71
  %136 = vmatpush1.bf16.msra.mxu0 %v70
  %137 = vmatprep.subr.bf16.mxu0 %v75
  %138 = vmatpush1.bf16.msra.mxu0 %v74
  %139 = vmatprep.subr.bf16.mxu0 0
  %140 = vmatpush1.bf16.msra.mxu0 0
  %141 = vmatprep.subr.bf16.mxu0 0
  %142 = vmatpush1.bf16.msra.mxu0 0
  %143 = vmatprep.subr.bf16.mxu0 0
  %144 = vmatpush1.bf16.msra.mxu0 0
  %145 = vmatprep.subr.bf16.mxu0 0
  %146 = vmatpush1.bf16.msra.mxu0 0
  %147 = vmatprep.subr.bf16.mxu0 0
  %148 = vmatpush1.bf16.msra.mxu0 0
  %149 = vmatprep.subr.bf16.mxu0 0
  %150 = vmatpush1.bf16.msra.mxu0 0
  %151 = vmatprep.subr.bf16.mxu0 0
  %152 = vmatpush1.bf16.msra.mxu0 0
  %153 = vmatprep.subr.bf16.mxu0 0
  %154 = vmatpush1.bf16.msra.mxu0 0
  %155 = vmatprep.subr.bf16.mxu0 0
  %156 = vmatpush1.bf16.msra.mxu0 0
  %157 = vmatprep.subr.bf16.mxu0 0
  %158 = vmatpush1.bf16.msra.mxu0 0
  %159 = vmatprep.subr.bf16.mxu0 0
  %160 = vmatpush1.bf16.msra.mxu0 0
  %161 = vmatprep.subr.bf16.mxu0 0
  %162 = vmatpush1.bf16.msra.mxu0 0
  %163 = vmatprep.subr.bf16.mxu0 0
  %164 = vmatpush1.bf16.msra.mxu0 0
  %165 = vmatprep.mubr.bf16.mxu0 0
  %166 = vmatmul.mubr.bf16.gmra.mrb[0].mxu0 %v90
  %v167 = vpop.f32.mrb[0].mxu0
  %v168 = vadd.f32 0.0, %v167
  %v169 = vpop.f32.mrb[0].mxu0
  %v170 = vadd.f32 0.0, %v169
  %v171 = vpop.f32.mrb[0].mxu0
  %v172 = vpop.f32.mrb[0].mxu0
  %173 = vdwg.mxu0
  %v174 = vld [vmem:[%s2] sm:$0xf]
  %v176 = vlaneseq
  %v177 = vshrl.u32 %v176, 7
  %v178 = vsub.s32 0, %v177
  %v179 = vrot.slane %v174, %v178
  %v180 = vlaneseq
  %v181 = vshrl.u32 %v180, 7
  %v182 = vsub.s32 1, %v181
  %v183 = vrot.slane %v174, %v182
  %v184 = vlaneseq
  %v185 = vshrl.u32 %v184, 7
  %v186 = vsub.s32 2, %v185
  %v187 = vrot.slane %v174, %v186
  %v188 = vlaneseq
  %v189 = vshrl.u32 %v188, 7
  %v190 = vsub.s32 3, %v189
  %v191 = vrot.slane %v174, %v190
  %v196 = vsub.f32 %v127, %v179
  %v197 = vsub.f32 %v129, %v183
  %v198 = vsub.f32 %v168, %v187
  %v199 = vsub.f32 %v170, %v191
  %v200 = vmul.f32 %v196, %v196
  %v201 = vmul.f32 %v197, %v197
  %v202 = vmul.f32 %v198, %v198
  %v203 = vmul.f32 %v199, %v199
  %v204 = vmul.f32 %v200, -25.0
  %v205 = vmul.f32 %v201, -25.0
  %v206 = vmul.f32 %v202, -25.0
  %v207 = vmul.f32 %v203, -25.0
  %v208 = vmul.f32 %v204, 1.442695
  %v209 = vpow.pop %v208
  %v210 = vmul.f32 %v205, 1.442695
  %v211 = vpow.pop %v210
  %v212 = vmul.f32 %v206, 1.442695
  %v213 = vpow.pop %v212
  %v214 = vmul.f32 %v207, 1.442695
  %v215 = vpow.pop %v214
  %216 = vst [vmem:[%s3] sm:$0xff] %v209
  %217 = vst [vmem:[%s3 + $0x8] sm:$0xff] %v211
  %218 = vst [vmem:[%s3 + $0x10] sm:$0xff] %v213
  %vm219 = vcmask 916480
  %220 = vst.msk [vmem:[%s3 + $0x18] sm:$0xff] %vm219, %v215
  // Predicated region
  $region14: #{_gaussian_expand.1} parent=0 // pred_check
    _
  $region15: #{_gaussian_expand.1} parent=0 // pred_check_branch
    %222 = sbr.rel (0) target = $region17
  $region16: #{_gaussian_expand.1} parent=0 // pred_region
    _
  $region17: #{_gaussian_expand.1} parent=0 // pred_fallthru
    _
  // Predicated region
  $region18: #{_gaussian_expand.1} parent=0 // pred_check
    _
  $region19: #{_gaussian_expand.1} parent=0 // pred_check_branch
    %224 = sbr.rel (0) target = $region21
  $region20: #{_gaussian_expand.1} parent=0 // pred_region
    _
  $region21: #{_gaussian_expand.1} parent=0 // pred_fallthru
    _

</llo_original>
